<compile_context>
chip_gen: v7x
topology: tpu7x:2x2x1
jax: 0.10.0
libtpu: 0.0.40
codegen_flags: <defaults>
</compile_context>

<pallas_src>
import functools

import jax
import jax.numpy as jnp
from jax.experimental import pallas as pl
from jax.experimental.pallas import tpu as pltpu


def _clamp_kernel(x_ref, o_ref, *, min_val, max_val):
    x = x_ref[...]
    # Reproduce torch semantics exactly: clamp(clamp(x, min=min), max=max).
    y = jnp.maximum(x, jnp.asarray(min_val, x.dtype))
    y = jnp.minimum(y, jnp.asarray(max_val, y.dtype))
    o_ref[...] = y


_LANE_CANDIDATES = (4096, 2048, 1024, 512, 256, 128)
_TARGET_BLOCK_BYTES = 8 * 1024 * 1024    # ~8 MiB/block -> 4x blocks = 32 MiB live VMEM
_VMEM_LIMIT_BYTES = 48 * 1024 * 1024     # headroom above 4x block; < v7x 64 MiB physical
_SMALL_INPUT_BYTES = 256 * 1024          # below this, fused XLA clip beats pallas_call


def _jnp_clamp(x, min_val, max_val):
    y = jnp.maximum(x, jnp.asarray(min_val, x.dtype))
    return jnp.minimum(y, jnp.asarray(max_val, y.dtype))


@functools.lru_cache(maxsize=1)
def _is_multi_tensorcore():
    """True on 2-TensorCore-per-chip parts (v7x); only they gain from grid >= 2."""
    try:
        return "v7" in jax.devices()[0].device_kind.lower()
    except Exception:  # pragma: no cover - conservative default
        return False


def clamp_pallas(x, min_val=0.0, max_val=1.0, *, min_pallas_bytes=_SMALL_INPUT_BYTES):
    """Elementwise clamp on an arbitrary-shape array via a Pallas TPU kernel."""
    orig_shape = x.shape
    dtype = x.dtype
    n = x.size
    if n == 0:
        return x
    itemsize = jnp.dtype(dtype).itemsize

    # Pick the widest lane dim (multiple of 128) that divides n exactly, so the
    # reshape is free (no pad copy) and stores stay lane-dense / unmasked.
    lane = None
    for cand in _LANE_CANDIDATES:
        if n % cand == 0:
            lane = cand
            break

    # Bypass paths: tiny inputs (launch + per-step overhead dominates) and
    # non-128-divisible sizes (a pad/concat + slice would triple HBM traffic).
    # A fused XLA clip is already at the 2n-byte roofline for both cases.
    if lane is None or n * itemsize < min_pallas_bytes:
        return _jnp_clamp(x, min_val, max_val)

    rows = n // lane
    x2d = jnp.ravel(x).reshape(rows, lane)  # free reshape: lane divides n exactly

    # dtype-native sublane tile: f32 -> 8, bf16/f16 -> 16, int8/fp8 -> 32.
    sub = max(8, 32 // itemsize)
    max_tile_rows = max(sub, _TARGET_BLOCK_BYTES // (lane * itemsize))

    if rows > max_tile_rows:
        # Big input: ~8 MiB blocks; partial edge block handled by Pallas.
        tile_rows = max(sub, (max_tile_rows // sub) * sub)
    elif _is_multi_tensorcore() and rows >= 2 * sub:
        # Fits in one block; on a 2-TC part split into two balanced,
        # sublane-aligned blocks so both TensorCores stream concurrently.
        tile_rows = ((pl.cdiv(rows, 2) + sub - 1) // sub) * sub
    else:
        tile_rows = rows  # full second-to-last dim is always a legal block dim

    grid = (pl.cdiv(rows, tile_rows),)

    kernel = functools.partial(_clamp_kernel, min_val=min_val, max_val=max_val)

    out2d = pl.pallas_call(
        kernel,
        out_shape=jax.ShapeDtypeStruct((rows, lane), dtype),
        grid_spec=pltpu.PrefetchScalarGridSpec(
            num_scalar_prefetch=0,
            grid=grid,
            in_specs=[pl.BlockSpec((tile_rows, lane), lambda i: (i, 0))],
            out_specs=pl.BlockSpec((tile_rows, lane), lambda i: (i, 0)),
        ),
        compiler_params=pltpu.CompilerParams(
            dimension_semantics=("parallel",),
            vmem_limit_bytes=_VMEM_LIMIT_BYTES,
        ),
        cost_estimate=pl.CostEstimate(
            flops=2 * n, transcendentals=0, bytes_accessed=2 * n * itemsize
        ),
    )(x2d)

    return out2d.reshape(orig_shape)


class ClampPallas:
    """JAX/Pallas equivalent of the torch Clamp module (no parameters)."""

    def __init__(self, min=0, max=1):
        self.min = min
        self.max = max

    def __call__(self, x):
        return clamp_pallas(x, self.min, self.max)


if __name__ == "__main__":
    key = jax.random.PRNGKey(0)
    module = ClampPallas(min=0, max=1)

    # Small NCHW input, values well outside [0, 1] to exercise both bounds.
    x = jax.random.normal(key, (2, 4, 16, 16), dtype=jnp.float32) * 3.0
    ref = jnp.minimum(jnp.maximum(x, 0.0), 1.0)

    # Force the Pallas path (the size heuristic would normally bypass an 8 KiB
    # input) so the kernel itself is compiled and run.
    out = jax.block_until_ready(clamp_pallas(x, 0.0, 1.0, min_pallas_bytes=0))
    assert out.shape == x.shape and out.dtype == x.dtype
    assert bool(jnp.allclose(out, ref)), "mismatch vs reference clamp (pallas path)"

    # Default module path: small input -> fused XLA clip bypass.
    out_bypass = jax.block_until_ready(module(x))
    assert bool(jnp.allclose(out_bypass, ref)), "mismatch vs reference clamp (bypass path)"

    # Non-128-divisible flat size -> jnp fallback (no pad/concat copies).
    x2 = jax.random.normal(jax.random.PRNGKey(1), (3, 5, 7), dtype=jnp.float32) * 3.0
    out2 = jax.block_until_ready(module(x2))
    ref2 = jnp.minimum(jnp.maximum(x2, 0.0), 1.0)
    assert out2.shape == x2.shape and out2.dtype == x2.dtype
    assert bool(jnp.allclose(out2, ref2)), "mismatch vs reference clamp (fallback path)"

    print("KERNEL_OK")
</pallas_src>

<mosaic_0001>
module attributes {stable_mosaic.version = 11 : i64} {
  func.func @_clamp_kernel(%arg0: i32, %arg1: memref<1x2048xf32, #tpu.memory_space<vmem>>, %arg2: memref<1x2048xf32, #tpu.memory_space<vmem>>) attributes {dimension_semantics = [#tpu.dimension_semantics<parallel>], iteration_bounds = array<i64: 1>, scalar_prefetch = 0 : i64, scratch_operands = 0 : i64, tpu.core_type = #tpu.core_type<tc>, window_params = [{transform_indices = @transform_0, window_bounds = array<i64: 1, 2048>}, {transform_indices = @transform_1, window_bounds = array<i64: 1, 2048>}]} {
    %c0 = arith.constant 0 : index
    %c0_0 = arith.constant 0 : index
    %0 = vector.load %arg1[%c0, %c0_0] : memref<1x2048xf32, #tpu.memory_space<vmem>>, vector<1x2048xf32>
    %cst = arith.constant 0.000000e+00 : f32
    %1 = vector.broadcast %cst : f32 to vector<1x2048xf32>
    %2 = arith.maximumf %0, %1 : vector<1x2048xf32>
    %cst_1 = arith.constant 1.000000e+00 : f32
    %3 = vector.broadcast %cst_1 : f32 to vector<1x2048xf32>
    %4 = arith.minimumf %2, %3 : vector<1x2048xf32>
    %c0_2 = arith.constant 0 : index
    %c0_3 = arith.constant 0 : index
    %5 = vector.load %arg2[%c0_2, %c0_3] : memref<1x2048xf32, #tpu.memory_space<vmem>>, vector<1x2048xf32>
    tpu.vector_store %arg2[%c0_2, %c0_3], %4 {strides = array<i32>} : memref<1x2048xf32, #tpu.memory_space<vmem>>, vector<1x2048xf32>,
    return
  }
  func.func @transform_0(%arg0: i32) -> (i32, i32) {
    %c0_i32 = arith.constant 0 : i32
    %c0_i32_0 = arith.constant 0 : i32
    return %arg0, %c0_i32 : i32, i32
  }
  func.func @transform_1(%arg0: i32) -> (i32, i32) {
    %c0_i32 = arith.constant 0 : i32
    %c0_i32_0 = arith.constant 0 : i32
    return %arg0, %c0_i32 : i32, i32
  }
}

</mosaic_0001>

<llo_original>
// kernel: tpu_custom_call.1
$region0: #{tpu_custom_call.1}
  #allocation0 [shape = 'u32[]', space=smem, size = 0x4, offset = 0x4, fixed_abs, tag = 'smem constant byte address 0x4 - core index']
  #allocation1 [shape = 'u32[144,128]{1,0:T(1,128)}', space=vmem, size = 0x12000, scoped, tag = 'internal scratch']
  %s0 = inlined_call_operand.hbm [shape: f32[1,2048], index: 0, kind: input, shape index: {}]
  %s1 = inlined_call_operand.hbm [shape: f32[1,2048], index: 1, kind: output, shape index: {}]
  %s2 = sld [smem:[#allocation0]]
  $region18: #{tpu_custom_call.1} parent=0
    _
  %s4 = ssub.s32 1, %s2
  %s5 = scalar_select 0, %s4, %s2
  $region1: #{tpu_custom_call.1} parent=0
    #allocation2 [shape = 'u8[8192]{0}', space=vmem, size = 0x2000, scoped, tag = 'input window, operand 0, single buffered']
    #allocation3 [shape = 's32[1]{0}', space=sflag, size = 0x4, scoped, tag = 'scoped memory for tpu_custom_call.1']
    #allocation4 [shape = 's32[1]{0}', space=sflag, size = 0x4, scoped, tag = 'scoped memory for tpu_custom_call.1']
    #allocation5 [shape = 'u8[8192]{0}', space=vmem, size = 0x2000, scoped, tag = 'output window, operand 0, single buffered']
    %6 = vsyncpa [#allocation3], 0
    %7 = vsyncpa [#allocation4], 0
    // Predicated region
    $region2: #{tpu_custom_call.1} parent=1 // pred_check
      _
    $region3: #{tpu_custom_call.1} parent=1 // pred_check_branch
      %9 = sbr.rel (0) target = $region5
    $region4: #{tpu_custom_call.1} parent=1 // pred_region
      %s11 = ssub.s32 256, 256
      %12 = vsyncadd [#allocation3], %s11
      %s14 = sshll.u32 [#allocation2], 4
      %s15 = int_to_ptr.vmem [resolvable:$true] %s14
      %17 = dma.hbm_to_vmem [thread:$0]  %s0, 256, %s15, [#allocation3]
    $region5: #{tpu_custom_call.1} parent=1 // pred_fallthru
      _
    // Predicated region
    $region6: #{tpu_custom_call.1} parent=1 // pred_check
      _
    $region7: #{tpu_custom_call.1} parent=1 // pred_check_branch
      %19 = sbr.rel (0) target = $region9
    $region8: #{tpu_custom_call.1} parent=1 // pred_region
      %20 = dma.done [#allocation3], 256
    $region9: #{tpu_custom_call.1} parent=1 // pred_fallthru
      _
    %v21 = vld [vmem:[#allocation2] sm:$0xff]
    %v22 = vld [vmem:[#allocation2 + $0x8] sm:$0xff]
    %v23 = vmax.f32 %v21, 0.0
    %v24 = vmax.f32 %v22, 0.0
    %v25 = vmin.f32 %v23, 1.0
    %v26 = vmin.f32 %v24, 1.0
    %27 = vst [vmem:[#allocation5] sm:$0xff] %v25
    %28 = vst [vmem:[#allocation5 + $0x8] sm:$0xff] %v26
    // Predicated region
    $region10: #{tpu_custom_call.1} parent=1 // pred_check
      _
    $region11: #{tpu_custom_call.1} parent=1 // pred_check_branch
      %30 = sbr.rel (0) target = $region13
    $region12: #{tpu_custom_call.1} parent=1 // pred_region
      %s32 = ssub.s32 256, 256
      %33 = vsyncadd [#allocation4], %s32
      %s35 = sshll.u32 [#allocation5], 4
      %s36 = int_to_ptr.vmem [resolvable:$true] %s35
      %38 = dma.vmem_to_hbm [thread:$0]  %s36, 256, %s1, [#allocation4]
    $region13: #{tpu_custom_call.1} parent=1 // pred_fallthru
      _
    // Predicated region
    $region14: #{tpu_custom_call.1} parent=1 // pred_check
      _
    $region15: #{tpu_custom_call.1} parent=1 // pred_check_branch
      %40 = sbr.rel (0) target = $region17
    $region16: #{tpu_custom_call.1} parent=1 // pred_region
      %41 = dma.done [#allocation4], 256
    $region17: #{tpu_custom_call.1} parent=1 // pred_fallthru
      _
    %42 = vsyncpa [#allocation3], 1
    %43 = vsyncpa [#allocation4], 1

</llo_original>
